<compile_context>
chip_gen: v7x
topology: tpu7x:2x2x1
jax: 0.10.0
libtpu: 0.0.40
codegen_flags: <defaults>
</compile_context>

<pallas_src>
import jax
import jax.numpy as jnp
from jax import lax
from jax.experimental import pallas as pl
from jax.experimental.pallas import tpu as pltpu


# ---------------------------------------------------------------------------
# DDIMScheduler (diffusers defaults): num_train_timesteps=1000,
# beta_start=1e-4, beta_end=2e-2, linear beta schedule.
# Deterministic, built in-script — acts as the "parameters" of the module.
# ---------------------------------------------------------------------------
def make_alphas_cumprod(num_train_timesteps: int = 1000,
                        beta_start: float = 1e-4,
                        beta_end: float = 2e-2) -> jnp.ndarray:
    betas = jnp.linspace(beta_start, beta_end, num_train_timesteps,
                         dtype=jnp.float32)
    alphas = 1.0 - betas
    return jnp.cumprod(alphas)          # (num_train_timesteps,) f32


# ---------------------------------------------------------------------------
# Pallas kernel: elementwise FMA-form math on one tile.
#   out = x * b - a*b          with  b = rsqrt(1 - acp),  a = 0.5 * sqrt(acp)
# b_ref / ab_ref are either (tb, 1) per-row scalars (broadcast across lanes)
# or full (tb, td) tiles — the same body handles both layouts.
# x is upcast to f32 in-kernel (free on the VPU); output stored in out dtype.
# ---------------------------------------------------------------------------
def ddim_noise_kernel(x_ref, b_ref, ab_ref, out_ref):
    x = x_ref[...].astype(jnp.float32)
    out_ref[...] = (x * b_ref[...] - ab_ref[...]).astype(out_ref.dtype)


def ddim_extract_noise(noisy_samples: jnp.ndarray,
                       t: jnp.ndarray,
                       alphas_cumprod: jnp.ndarray,
                       *,
                       row_tile: int = 512,
                       col_tile: int = 2048) -> jnp.ndarray:
    """noisy_samples: (B, D); t: (B,) int32 in [0, num_train_timesteps)."""
    B, D = noisy_samples.shape
    out_dtype = noisy_samples.dtype

    # Tiny per-row gather + scalar folding (O(B) work) stays in plain JAX/XLA.
    # Note: rsqrt(1 - acp) is finite for the default linear-beta schedule
    # (max acp ~= 0.9999); clamp here if the schedule ever becomes configurable.
    acp = alphas_cumprod[t].astype(jnp.float32).reshape(B, 1)
    b = lax.rsqrt(1.0 - acp)                      # (B, 1)
    ab = jnp.sqrt(acp) * (0.5 * b)                # (B, 1)  == a * b

    vmem_params = pltpu.CompilerParams(
        dimension_semantics=("parallel", "parallel"),
        vmem_limit_bytes=48 << 20)

    if D >= 128:
        # ----- main path: per-row scalars, 2-D tiled grid ------------------
        #  - 512 x 2048 f32 blocks = 4 MiB; double-buffered in+out ~16 MiB,
        #    safely under the explicit 48 MiB scoped-VMEM limit (and v7x's
        #    64 MiB physical).
        tb = B if B <= row_tile else row_tile      # row_tile is a multiple of 8
        td = D if D <= col_tile else col_tile      # col_tile is a multiple of 128
        grid = (pl.cdiv(B, tb), pl.cdiv(D, td))
        return pl.pallas_call(
            ddim_noise_kernel,
            out_shape=jax.ShapeDtypeStruct((B, D), out_dtype),
            grid_spec=pl.GridSpec(
                grid=grid,
                in_specs=[
                    pl.BlockSpec((tb, td), lambda i, j: (i, j)),
                    pl.BlockSpec((tb, 1), lambda i, j: (i, 0)),
                    pl.BlockSpec((tb, 1), lambda i, j: (i, 0)),
                ],
                out_specs=pl.BlockSpec((tb, td), lambda i, j: (i, j)),
            ),
            compiler_params=vmem_params,
        )(noisy_samples, b, ab)

    # ----- small-D path (D < 128): lane-dense layout ------------------------
    # Broadcasting the per-row scalars to (B, D) is tiny (D < 128), and makes
    # the op purely elementwise over equal shapes, so we are free to reshape
    # everything into a lane-dense (rows, 128) slab for full-width stores.
    b_full = jnp.broadcast_to(b, (B, D))
    ab_full = jnp.broadcast_to(ab, (B, D))
    lane = 128
    n = B * D

    if n % lane == 0 and n >= 8 * lane:
        rows = n // lane
        x2 = noisy_samples.reshape(rows, lane)
        b2 = b_full.reshape(rows, lane)
        ab2 = ab_full.reshape(rows, lane)
        # 4096 rows x 128 lanes x 4 B = 2 MiB f32 blocks.
        tb = rows if rows <= 4096 else 4096
        grid = (pl.cdiv(rows, tb),)
        out2 = pl.pallas_call(
            ddim_noise_kernel,
            out_shape=jax.ShapeDtypeStruct((rows, lane), out_dtype),
            grid_spec=pl.GridSpec(
                grid=grid,
                in_specs=[
                    pl.BlockSpec((tb, lane), lambda i: (i, 0)),
                    pl.BlockSpec((tb, lane), lambda i: (i, 0)),
                    pl.BlockSpec((tb, lane), lambda i: (i, 0)),
                ],
                out_specs=pl.BlockSpec((tb, lane), lambda i: (i, 0)),
            ),
            compiler_params=pltpu.CompilerParams(
                dimension_semantics=("parallel",),
                vmem_limit_bytes=48 << 20),
        )(x2, b2, ab2)
        return out2.reshape(B, D)

    # Tiny fallback (covers the 8x2 test shape): one full-array block — block
    # shape equals the array shape, so it is exempt from the (8,128) rule.
    return pl.pallas_call(
        ddim_noise_kernel,
        out_shape=jax.ShapeDtypeStruct((B, D), out_dtype),
        grid_spec=pl.GridSpec(
            grid=(1,),
            in_specs=[
                pl.BlockSpec((B, D), lambda i: (0, 0)),
                pl.BlockSpec((B, D), lambda i: (0, 0)),
                pl.BlockSpec((B, D), lambda i: (0, 0)),
            ],
            out_specs=pl.BlockSpec((B, D), lambda i: (0, 0)),
        ),
    )(noisy_samples, b_full, ab_full)


# ---------------------------------------------------------------------------
# Pure-JAX reference for verification (literal PyTorch semantics).
# ---------------------------------------------------------------------------
def ddim_extract_noise_ref(noisy_samples, t, alphas_cumprod):
    original = jnp.ones_like(noisy_samples) * 0.5
    sqrt_alpha = jnp.sqrt(alphas_cumprod[t])[:, None]
    sqrt_one_minus_alpha = jnp.sqrt(1.0 - alphas_cumprod[t])[:, None]
    return (noisy_samples - sqrt_alpha * original) / sqrt_one_minus_alpha


def _check(B, D, key, alphas_cumprod, num_train_timesteps):
    kx, kt = jax.random.split(key)
    x = jax.random.normal(kx, (B, D), dtype=jnp.float32)
    t = jax.random.randint(kt, (B,), 0, num_train_timesteps, dtype=jnp.int32)
    out = jax.block_until_ready(ddim_extract_noise(x, t, alphas_cumprod))
    ref = ddim_extract_noise_ref(x, t, alphas_cumprod)
    assert out.shape == (B, D) and out.dtype == jnp.float32
    assert jnp.allclose(out, ref, rtol=1e-5, atol=1e-5), f"mismatch at {(B, D)}"
    return out


if __name__ == "__main__":
    key = jax.random.PRNGKey(0)
    num_train_timesteps = 1000
    alphas_cumprod = make_alphas_cumprod(num_train_timesteps)

    keys = jax.random.split(key, 3)
    # Module's shape: output_dim = 2 (tiny fallback path).
    _check(8, 2, keys[0], alphas_cumprod, num_train_timesteps)
    # Row-scalar tiled path, including a partial row tile (600 % 512 != 0).
    _check(600, 384, keys[1], alphas_cumprod, num_train_timesteps)
    # Small-D lane-dense path (512*2 = 1024 elements -> (8, 128) slab).
    _check(512, 2, keys[2], alphas_cumprod, num_train_timesteps)

    print("KERNEL_OK")
</pallas_src>

<mosaic_0001>
module attributes {stable_mosaic.version = 11 : i64} {
  func.func @ddim_noise_kernel(%arg0: i32, %arg1: memref<8x2xf32, #tpu.memory_space<vmem>>, %arg2: memref<8x2xf32, #tpu.memory_space<vmem>>, %arg3: memref<8x2xf32, #tpu.memory_space<vmem>>, %arg4: memref<8x2xf32, #tpu.memory_space<vmem>>) attributes {dimension_semantics = [#tpu.dimension_semantics<arbitrary>], iteration_bounds = array<i64: 1>, scalar_prefetch = 0 : i64, scratch_operands = 0 : i64, tpu.core_type = #tpu.core_type<tc>, window_params = [{pipeline_mode = #tpu.pipeline_mode<synchronous>, transform_indices = @transform_0, window_bounds = array<i64: 8, 2>}, {pipeline_mode = #tpu.pipeline_mode<synchronous>, transform_indices = @transform_1, window_bounds = array<i64: 8, 2>}, {pipeline_mode = #tpu.pipeline_mode<synchronous>, transform_indices = @transform_2, window_bounds = array<i64: 8, 2>}, {pipeline_mode = #tpu.pipeline_mode<synchronous>, transform_indices = @transform_3, window_bounds = array<i64: 8, 2>}]} {
    %c0 = arith.constant 0 : index
    %c0_0 = arith.constant 0 : index
    %0 = vector.load %arg1[%c0, %c0_0] : memref<8x2xf32, #tpu.memory_space<vmem>>, vector<8x2xf32>
    %c0_1 = arith.constant 0 : index
    %c0_2 = arith.constant 0 : index
    %1 = vector.load %arg2[%c0_1, %c0_2] : memref<8x2xf32, #tpu.memory_space<vmem>>, vector<8x2xf32>
    %2 = arith.mulf %0, %1 : vector<8x2xf32>
    %c0_3 = arith.constant 0 : index
    %c0_4 = arith.constant 0 : index
    %3 = vector.load %arg3[%c0_3, %c0_4] : memref<8x2xf32, #tpu.memory_space<vmem>>, vector<8x2xf32>
    %4 = arith.subf %2, %3 : vector<8x2xf32>
    %c0_5 = arith.constant 0 : index
    %c0_6 = arith.constant 0 : index
    %5 = vector.load %arg4[%c0_5, %c0_6] : memref<8x2xf32, #tpu.memory_space<vmem>>, vector<8x2xf32>
    tpu.vector_store %arg4[%c0_5, %c0_6], %4 {strides = array<i32>} : memref<8x2xf32, #tpu.memory_space<vmem>>, vector<8x2xf32>,
    return
  }
  func.func @transform_0(%arg0: i32) -> (i32, i32) {
    %c0_i32 = arith.constant 0 : i32
    %c0_i32_0 = arith.constant 0 : i32
    %c0_i32_1 = arith.constant 0 : i32
    return %c0_i32, %c0_i32_0 : i32, i32
  }
  func.func @transform_1(%arg0: i32) -> (i32, i32) {
    %c0_i32 = arith.constant 0 : i32
    %c0_i32_0 = arith.constant 0 : i32
    %c0_i32_1 = arith.constant 0 : i32
    return %c0_i32, %c0_i32_0 : i32, i32
  }
  func.func @transform_2(%arg0: i32) -> (i32, i32) {
    %c0_i32 = arith.constant 0 : i32
    %c0_i32_0 = arith.constant 0 : i32
    %c0_i32_1 = arith.constant 0 : i32
    return %c0_i32, %c0_i32_0 : i32, i32
  }
  func.func @transform_3(%arg0: i32) -> (i32, i32) {
    %c0_i32 = arith.constant 0 : i32
    %c0_i32_0 = arith.constant 0 : i32
    %c0_i32_1 = arith.constant 0 : i32
    return %c0_i32, %c0_i32_0 : i32, i32
  }
}

</mosaic_0001>

<llo_original>
// kernel: tpu_custom_call.1
$region0: #{tpu_custom_call.1}
  #allocation0 [shape = 'u32[]', space=smem, size = 0x4, offset = 0x4, fixed_abs, tag = 'smem constant byte address 0x4 - core index']
  #allocation1 [shape = 'u32[144,128]{1,0:T(1,128)}', space=vmem, size = 0x12000, scoped, tag = 'internal scratch']
  %s0 = inlined_call_operand.vmem [shape: f32[8,2], index: 0, kind: input, shape index: {}]
  %s1 = inlined_call_operand.vmem [shape: f32[8,2], index: 1, kind: input, shape index: {}]
  %s2 = inlined_call_operand.vmem [shape: f32[8,2], index: 2, kind: input, shape index: {}]
  %s3 = inlined_call_operand.vmem [shape: f32[8,2], index: 3, kind: output, shape index: {}]
  %s4 = sld [smem:[#allocation0]]
  $region22: #{tpu_custom_call.1} parent=0
    _
  %s6 = ssub.s32 1, %s4
  %s7 = scalar_select 0, %s6, %s4
  // Predicated region
  $region2: #{tpu_custom_call.1} parent=0 // pred_check
    _
  $region3: #{tpu_custom_call.1} parent=0 // pred_check_branch
    %9 = sbr.rel (0) target = $region5
  $region4: #{tpu_custom_call.1} parent=0 // pred_region
    _
  $region5: #{tpu_custom_call.1} parent=0 // pred_fallthru
    _
  // Predicated region
  $region6: #{tpu_custom_call.1} parent=0 // pred_check
    _
  $region7: #{tpu_custom_call.1} parent=0 // pred_check_branch
    %11 = sbr.rel (0) target = $region9
  $region8: #{tpu_custom_call.1} parent=0 // pred_region
    _
  $region9: #{tpu_custom_call.1} parent=0 // pred_fallthru
    _
  // Predicated region
  $region10: #{tpu_custom_call.1} parent=0 // pred_check
    _
  $region11: #{tpu_custom_call.1} parent=0 // pred_check_branch
    %13 = sbr.rel (0) target = $region13
  $region12: #{tpu_custom_call.1} parent=0 // pred_region
    _
  $region13: #{tpu_custom_call.1} parent=0 // pred_fallthru
    _
  %v14 = vld [vmem:[%s0] sm:$0xff]
  %v15 = vld [vmem:[%s1] sm:$0xff]
  %v16 = vmul.f32 %v14, %v15
  %v17 = vld [vmem:[%s2] sm:$0xff]
  %v18 = vsub.f32 %v16, %v17
  %vm19 = vcmask 15360
  %20 = vst.msk [vmem:[%s3] sm:$0xff] %vm19, %v18
  // Predicated region
  $region14: #{tpu_custom_call.1} parent=0 // pred_check
    _
  $region15: #{tpu_custom_call.1} parent=0 // pred_check_branch
    %22 = sbr.rel (0) target = $region17
  $region16: #{tpu_custom_call.1} parent=0 // pred_region
    _
  $region17: #{tpu_custom_call.1} parent=0 // pred_fallthru
    _
  // Predicated region
  $region18: #{tpu_custom_call.1} parent=0 // pred_check
    _
  $region19: #{tpu_custom_call.1} parent=0 // pred_check_branch
    %24 = sbr.rel (0) target = $region21
  $region20: #{tpu_custom_call.1} parent=0 // pred_region
    _
  $region21: #{tpu_custom_call.1} parent=0 // pred_fallthru
    _

</llo_original>
